<compile_context>
chip_gen: v7x
topology: tpu7x:2x2x1
jax: 0.10.0
libtpu: 0.0.40
codegen_flags: <defaults>
</compile_context>

<pallas_src>
import functools
import math

import jax
import jax.numpy as jnp
from jax.experimental import pallas as pl
from jax.experimental.pallas import tpu as pltpu

# LayerNorm is HBM-bound: ~1-4 MiB of x per grid step saturates the HBM
# roofline on v5e/v6e/v7x while keeping VMEM pressure low.
_TARGET_TILE_BYTES = 2 * 1024 * 1024
_MIN_GRID_STEPS = 8            # >= 4 steps per TensorCore on v7x's 2 TCs
_VMEM_LIMIT_BYTES = 48 * 1024 * 1024   # < 64 MiB physical on every generation


def _sublane_multiple(dtype):
    """Rows per vreg sublane tile: 8 for 4-byte, 16 for 2-byte, 32 for 1-byte."""
    itemsize = jnp.dtype(dtype).itemsize
    return 8 * max(4 // min(itemsize, 4), 1)


def _pick_block_rows(n_rows, width, in_dtype):
    """Row-tile size targeting ~_TARGET_TILE_BYTES of x per grid step.

    A fixed byte target (instead of "fill VMEM") keeps the kernel on the HBM
    roofline with low VMEM pressure: double-buffered IO plus the ~3x
    block_rows*width*4 bytes of f32 intermediates stay well under the scoped
    limit on all generations.
    """
    sub = _sublane_multiple(in_dtype)
    if n_rows <= sub:
        return int(n_rows)
    itemsize = jnp.dtype(in_dtype).itemsize
    br = max(_TARGET_TILE_BYTES // max(width * itemsize, 1), sub)
    br = min(int(br), int(n_rows))
    # Keep >= _MIN_GRID_STEPS grid steps when the problem is big enough so the
    # BlockSpec pipeline can double-buffer on each TensorCore.
    if n_rows >= _MIN_GRID_STEPS * sub:
        br = min(br, int(pl.cdiv(n_rows, _MIN_GRID_STEPS)))
    br = max((br // sub) * sub, sub)
    return int(br)


def _layernorm_kernel(x_ref, a_ref, b_ref, o_ref, *, eps):
    """General path (F >= 128): one LayerNorm row per tile row (lane reduce)."""
    x = x_ref[...].astype(jnp.float32)                    # (block_rows, F)
    f = x.shape[-1]
    mean = jnp.mean(x, axis=-1, keepdims=True)
    diff = x - mean
    # Unbiased variance (divisor N-1), matching torch.std's default.
    # F == 1 is degenerate (torch gives NaN); guard gives output = b there.
    var = jnp.sum(diff * diff, axis=-1, keepdims=True) * (1.0 / max(f - 1, 1))
    denom = jnp.sqrt(var) + eps
    r = pl.reciprocal(denom, approx=True)                 # EUP vrcp, off the VALU
    r = r * (2.0 - denom * r)                             # one Newton step -> ~f32 exact
    a = a_ref[...].astype(jnp.float32)                    # (1, F)
    b = b_ref[...].astype(jnp.float32)
    o_ref[...] = (a * (diff * r) + b).astype(o_ref.dtype)


def _layernorm_packed_kernel(x_ref, a_ref, b_ref, o_ref, *, eps, feat, feat_pad):
    """Lane-dense path for F < 128: each 128-lane row holds g = 128 // feat_pad
    independent LayerNorm rows (features padded to feat_pad, a power-of-two
    divisor of 128). Per-group sums come from a block-diagonal matmul on the
    otherwise-idle MXU; padded lanes are masked out of the reduction."""
    x = x_ref[...].astype(jnp.float32)                    # (block_rows, 128)
    width = x.shape[-1]
    # Block-diagonal 0/1 segment matrix built in-kernel (no DMA stream, no
    # extra VMEM buffers): seg[j, k] = 1 iff lanes j,k share a group AND j is
    # a real (non-padding) feature lane. feat_pad is a power of two, so group
    # index / lane-in-group are cheap bit ops.
    shift = int(feat_pad).bit_length() - 1
    lane_mask = feat_pad - 1
    j = jax.lax.broadcasted_iota(jnp.int32, (width, width), 0)
    k = jax.lax.broadcasted_iota(jnp.int32, (width, width), 1)
    same_group = (j >> shift) == (k >> shift)
    j_real = (j & lane_mask) < feat
    # TODO(synk): seg could be bf16 (0/1 exact) to cut MXU passes on v5e; kept
    # f32 since this path is HBM-bound.
    seg = jnp.where(jnp.logical_and(same_group, j_real), 1.0, 0.0)

    mean = jnp.dot(x, seg, preferred_element_type=jnp.float32) * (1.0 / feat)
    diff = x - mean
    sumsq = jnp.dot(diff * diff, seg, preferred_element_type=jnp.float32)
    denom = jnp.sqrt(sumsq * (1.0 / max(feat - 1, 1))) + eps
    r = pl.reciprocal(denom, approx=True)
    r = r * (2.0 - denom * r)
    a = a_ref[...].astype(jnp.float32)                    # (1, 128) tiled weights
    b = b_ref[...].astype(jnp.float32)
    o_ref[...] = (a * (diff * r) + b).astype(o_ref.dtype)


def layer_norm(x, a_2, b_2, eps=1e-6, block_rows=None):
    """LayerNorm over the last axis of x (torch-style: unbiased std, eps on std)."""
    orig_shape = x.shape
    feat = int(orig_shape[-1])
    rows = int(math.prod(orig_shape[:-1]))
    out_dtype = x.dtype

    use_packed = feat < 128
    if use_packed:
        # Pad each LayerNorm row to feat_pad (smallest power-of-two divisor of
        # 128 that is >= feat) and pack g = 128 // feat_pad rows per 128-lane
        # vector row, so every HBM load/store and every vreg is fully
        # lane-dense. Rows are padded up to a multiple of g with zeros.
        feat_pad = feat
        while 128 % feat_pad != 0:
            feat_pad += 1
        g = 128 // feat_pad
        width = 128
        rows_pad = int(pl.cdiv(rows, g)) * g
        x2 = x.reshape(rows, feat)
        if feat_pad != feat or rows_pad != rows:
            x2 = jnp.pad(x2, ((0, rows_pad - rows), (0, feat_pad - feat)))
        n_rows = rows_pad // g
        x2 = x2.reshape(n_rows, width)
        a_pad = jnp.pad(a_2.reshape(-1).astype(jnp.float32), (0, feat_pad - feat))
        b_pad = jnp.pad(b_2.reshape(-1).astype(jnp.float32), (0, feat_pad - feat))
        a2 = jnp.tile(a_pad, g).reshape(1, width)
        b2 = jnp.tile(b_pad, g).reshape(1, width)
        kernel = functools.partial(_layernorm_packed_kernel, eps=float(eps),
                                   feat=feat, feat_pad=feat_pad)
    else:
        feat_pad = feat
        g = 1
        rows_pad = rows
        width = feat
        n_rows = rows
        x2 = x.reshape(n_rows, width)
        a2 = a_2.reshape(1, width)
        b2 = b_2.reshape(1, width)
        kernel = functools.partial(_layernorm_kernel, eps=float(eps))

    if block_rows is None:
        block_rows = _pick_block_rows(n_rows, width, x.dtype)
    block_rows = int(min(block_rows, n_rows))

    grid = (pl.cdiv(n_rows, block_rows),)   # masked tail; never collapse the grid

    row_spec = pl.BlockSpec((block_rows, width), lambda i: (i, 0))
    # a2/b2 are grid-invariant and tiny; default double-buffering is fine (the
    # only big grid-invariant operand -- the seg matrix -- is built in-kernel).
    w_spec = pl.BlockSpec((1, width), lambda i: (0, 0))

    out = pl.pallas_call(
        kernel,
        out_shape=jax.ShapeDtypeStruct((n_rows, width), out_dtype),
        grid_spec=pltpu.PrefetchScalarGridSpec(
            num_scalar_prefetch=0,
            grid=grid,
            in_specs=[row_spec, w_spec, w_spec],
            out_specs=row_spec,
        ),
        compiler_params=pltpu.CompilerParams(
            dimension_semantics=("parallel",),   # megacore-shard the row grid
            vmem_limit_bytes=_VMEM_LIMIT_BYTES,
        ),
    )(x2, a2, b2)

    if use_packed:
        out = out.reshape(rows_pad, feat_pad)
        if feat_pad != feat:
            out = out[:, :feat]
        if rows_pad != rows:
            out = out[:rows]
    return out.reshape(orig_shape)


def _reference_layer_norm(x, a, b, eps):
    mean = x.mean(-1, keepdims=True)
    std = jnp.sqrt(((x - mean) ** 2).sum(-1, keepdims=True) / (x.shape[-1] - 1))
    return a * (x - mean) / (std + eps) + b


if __name__ == "__main__":
    # Shapes consistent with the module's forward: (batch, seq, hidden).
    batch, seq, hidden = 2, 8, 32
    x = jax.random.normal(jax.random.PRNGKey(0), (batch, seq, hidden), jnp.float32)

    # Deterministic params, same as the module's __init__.
    a_2 = jnp.ones((hidden,), jnp.float32)
    b_2 = jnp.zeros((hidden,), jnp.float32)

    # Packed (F < 128, exact divide) path.
    y = layer_norm(x, a_2, b_2, eps=1e-6)
    jax.block_until_ready(y)
    ref = _reference_layer_norm(x, a_2, b_2, 1e-6)
    err = float(jnp.max(jnp.abs(y - ref)))
    assert err < 2e-3, f"packed-path mismatch vs reference: {err}"

    # Lane-aligned feature dim exercises the general (lane-reduce) path.
    x_big = jax.random.normal(jax.random.PRNGKey(1), (2, 8, 128), jnp.float32)
    a_big = jnp.ones((128,), jnp.float32)
    b_big = jnp.zeros((128,), jnp.float32)
    y_big = layer_norm(x_big, a_big, b_big, eps=1e-6)
    jax.block_until_ready(y_big)
    err_big = float(jnp.max(jnp.abs(
        y_big - _reference_layer_norm(x_big, a_big, b_big, 1e-6))))
    assert err_big < 2e-3, f"general-path mismatch vs reference: {err_big}"

    # Ragged case: F doesn't divide 128 and rows don't divide the pack factor
    # -> padded lane-dense packed path with masked reductions.
    x_rag = jax.random.normal(jax.random.PRNGKey(2), (3, 7, 20), jnp.float32)
    a_rag = jnp.full((20,), 0.5, jnp.float32)
    b_rag = jnp.full((20,), 0.1, jnp.float32)
    y_rag = layer_norm(x_rag, a_rag, b_rag, eps=1e-6)
    jax.block_until_ready(y_rag)
    err_rag = float(jnp.max(jnp.abs(
        y_rag - _reference_layer_norm(x_rag, a_rag, b_rag, 1e-6))))
    assert err_rag < 2e-3, f"padded-packed-path mismatch vs reference: {err_rag}"

    print("KERNEL_OK")
</pallas_src>

<mosaic_0001>
module attributes {stable_mosaic.version = 11 : i64} {
  func.func @_layernorm_packed_kernel(%arg0: i32, %arg1: memref<4x128xf32, #tpu.memory_space<vmem>>, %arg2: memref<1x128xf32, #tpu.memory_space<vmem>>, %arg3: memref<1x128xf32, #tpu.memory_space<vmem>>, %arg4: memref<4x128xf32, #tpu.memory_space<vmem>>) attributes {dimension_semantics = [#tpu.dimension_semantics<parallel>], iteration_bounds = array<i64: 1>, scalar_prefetch = 0 : i64, scratch_operands = 0 : i64, tpu.core_type = #tpu.core_type<tc>, window_params = [{transform_indices = @transform_0, window_bounds = array<i64: 4, 128>}, {pipeline_mode = #tpu.pipeline_mode<synchronous>, transform_indices = @transform_1, window_bounds = array<i64: 1, 128>}, {pipeline_mode = #tpu.pipeline_mode<synchronous>, transform_indices = @transform_2, window_bounds = array<i64: 1, 128>}, {transform_indices = @transform_3, window_bounds = array<i64: 4, 128>}]} {
    %c0 = arith.constant 0 : index
    %c0_0 = arith.constant 0 : index
    %0 = vector.load %arg1[%c0, %c0_0] : memref<4x128xf32, #tpu.memory_space<vmem>>, vector<4x128xf32>
    %1 = tpu.iota {dimensions = array<i32: 0>} : vector<128x128xi32>
    %2 = tpu.iota {dimensions = array<i32: 1>} : vector<128x128xi32>
    %c5_i32 = arith.constant 5 : i32
    %3 = vector.broadcast %c5_i32 : i32 to vector<128x128xi32>
    %4 = arith.shrsi %1, %3 : vector<128x128xi32>
    %c5_i32_1 = arith.constant 5 : i32
    %5 = vector.broadcast %c5_i32_1 : i32 to vector<128x128xi32>
    %6 = arith.shrsi %2, %5 : vector<128x128xi32>
    %7 = arith.cmpi eq, %4, %6 : vector<128x128xi32>
    %c31_i32 = arith.constant 31 : i32
    %8 = vector.broadcast %c31_i32 : i32 to vector<128x128xi32>
    %9 = arith.andi %1, %8 : vector<128x128xi32>
    %c32_i32 = arith.constant 32 : i32
    %10 = vector.broadcast %c32_i32 : i32 to vector<128x128xi32>
    %11 = arith.cmpi slt, %9, %10 : vector<128x128xi32>
    %12 = arith.andi %7, %11 : vector<128x128xi1>
    %cst = arith.constant 1.000000e+00 : f32
    %cst_2 = arith.constant 0.000000e+00 : f32
    %13 = vector.broadcast %cst : f32 to vector<128x128xf32>
    %14 = vector.broadcast %cst_2 : f32 to vector<128x128xf32>
    %15 = arith.select %12, %13, %14 : vector<128x128xi1>, vector<128x128xf32>
    %cst_3 = arith.constant dense<0.000000e+00> : vector<4x128xf32>
    %16 = tpu.matmul %0, %15, %cst_3 {dimension_numbers = #tpu.dot_dimension_numbers<[1], [0], [0], [1], [0, 0, 1, 1], [], []>} : vector<4x128xf32>, vector<128x128xf32>, vector<4x128xf32> -> vector<4x128xf32>
    %cst_4 = arith.constant 3.125000e-02 : f32
    %17 = vector.broadcast %cst_4 : f32 to vector<4x128xf32>
    %18 = arith.mulf %16, %17 : vector<4x128xf32>
    %19 = arith.subf %0, %18 : vector<4x128xf32>
    %20 = arith.mulf %19, %19 : vector<4x128xf32>
    %cst_5 = arith.constant dense<0.000000e+00> : vector<4x128xf32>
    %21 = tpu.matmul %20, %15, %cst_5 {dimension_numbers = #tpu.dot_dimension_numbers<[1], [0], [0], [1], [0, 0, 1, 1], [], []>} : vector<4x128xf32>, vector<128x128xf32>, vector<4x128xf32> -> vector<4x128xf32>
    %cst_6 = arith.constant 0.0322580636 : f32
    %22 = vector.broadcast %cst_6 : f32 to vector<4x128xf32>
    %23 = arith.mulf %21, %22 : vector<4x128xf32>
    %24 = math.sqrt %23 : vector<4x128xf32>
    %cst_7 = arith.constant 9.99999997E-7 : f32
    %25 = vector.broadcast %cst_7 : f32 to vector<4x128xf32>
    %26 = arith.addf %24, %25 : vector<4x128xf32>
    %27 = tpu.reciprocal %26 {approx = true} : vector<4x128xf32> -> vector<4x128xf32>
    %28 = arith.mulf %26, %27 : vector<4x128xf32>
    %cst_8 = arith.constant 2.000000e+00 : f32
    %29 = vector.broadcast %cst_8 : f32 to vector<4x128xf32>
    %30 = arith.subf %29, %28 : vector<4x128xf32>
    %31 = arith.mulf %27, %30 : vector<4x128xf32>
    %c0_9 = arith.constant 0 : index
    %c0_10 = arith.constant 0 : index
    %32 = vector.load %arg2[%c0_9, %c0_10] : memref<1x128xf32, #tpu.memory_space<vmem>>, vector<1x128xf32>
    %c0_11 = arith.constant 0 : index
    %c0_12 = arith.constant 0 : index
    %33 = vector.load %arg3[%c0_11, %c0_12] : memref<1x128xf32, #tpu.memory_space<vmem>>, vector<1x128xf32>
    %34 = arith.mulf %19, %31 : vector<4x128xf32>
    %35 = vector.broadcast %32 : vector<1x128xf32> to vector<4x128xf32>
    %36 = arith.mulf %35, %34 : vector<4x128xf32>
    %37 = vector.broadcast %33 : vector<1x128xf32> to vector<4x128xf32>
    %38 = arith.addf %36, %37 : vector<4x128xf32>
    %c0_13 = arith.constant 0 : index
    %c0_14 = arith.constant 0 : index
    %39 = vector.load %arg4[%c0_13, %c0_14] : memref<4x128xf32, #tpu.memory_space<vmem>>, vector<4x128xf32>
    tpu.vector_store %arg4[%c0_13, %c0_14], %38 {strides = array<i32>} : memref<4x128xf32, #tpu.memory_space<vmem>>, vector<4x128xf32>,
    return
  }
  func.func @transform_0(%arg0: i32) -> (i32, i32) {
    %c0_i32 = arith.constant 0 : i32
    %c0_i32_0 = arith.constant 0 : i32
    return %arg0, %c0_i32 : i32, i32
  }
  func.func @transform_1(%arg0: i32) -> (i32, i32) {
    %c0_i32 = arith.constant 0 : i32
    %c0_i32_0 = arith.constant 0 : i32
    %c0_i32_1 = arith.constant 0 : i32
    return %c0_i32, %c0_i32_0 : i32, i32
  }
  func.func @transform_2(%arg0: i32) -> (i32, i32) {
    %c0_i32 = arith.constant 0 : i32
    %c0_i32_0 = arith.constant 0 : i32
    %c0_i32_1 = arith.constant 0 : i32
    return %c0_i32, %c0_i32_0 : i32, i32
  }
  func.func @transform_3(%arg0: i32) -> (i32, i32) {
    %c0_i32 = arith.constant 0 : i32
    %c0_i32_0 = arith.constant 0 : i32
    return %arg0, %c0_i32 : i32, i32
  }
}

</mosaic_0001>

<llo_original>
// kernel: tpu_custom_call.1
$region0: #{tpu_custom_call.1}
  #allocation0 [shape = 'u32[]', space=smem, size = 0x4, offset = 0x4, fixed_abs, tag = 'smem constant byte address 0x4 - core index']
  #allocation1 [shape = 'u32[144,128]{1,0:T(1,128)}', space=vmem, size = 0x12000, scoped, tag = 'internal scratch']
  %s0 = inlined_call_operand.hbm [shape: f32[4,128], index: 0, kind: input, shape index: {}]
  %s1 = inlined_call_operand.vmem [shape: f32[1,128], index: 1, kind: input, shape index: {}]
  %s2 = inlined_call_operand.vmem [shape: f32[1,128], index: 2, kind: input, shape index: {}]
  %s3 = inlined_call_operand.hbm [shape: f32[4,128], index: 3, kind: output, shape index: {}]
  %s4 = sld [smem:[#allocation0]]
  $region26: #{tpu_custom_call.1} parent=0
    _
  %s6 = ssub.s32 1, %s4
  %s7 = scalar_select 0, %s6, %s4
  $region1: #{tpu_custom_call.1} parent=0
    #allocation2 [shape = 'u8[2048]{0}', space=vmem, size = 0x800, scoped, tag = 'input window, operand 0, single buffered']
    #allocation3 [shape = 's32[1]{0}', space=sflag, size = 0x4, scoped, tag = 'scoped memory for tpu_custom_call.1']
    #allocation4 [shape = 's32[1]{0}', space=sflag, size = 0x4, scoped, tag = 'scoped memory for tpu_custom_call.1']
    #allocation5 [shape = 'u8[2048]{0}', space=vmem, size = 0x800, scoped, tag = 'output window, operand 0, single buffered']
    %8 = vsyncpa [#allocation3], 0
    %9 = vsyncpa [#allocation4], 0
    // Predicated region
    $region2: #{tpu_custom_call.1} parent=1 // pred_check
      _
    $region3: #{tpu_custom_call.1} parent=1 // pred_check_branch
      %11 = sbr.rel (0) target = $region5
    $region4: #{tpu_custom_call.1} parent=1 // pred_region
      %s13 = ssub.s32 64, 64
      %14 = vsyncadd [#allocation3], %s13
      %s16 = sshll.u32 [#allocation2], 4
      %s17 = int_to_ptr.vmem [resolvable:$true] %s16
      %19 = dma.hbm_to_vmem [thread:$0]  %s0, 64, %s17, [#allocation3]
    $region5: #{tpu_custom_call.1} parent=1 // pred_fallthru
      _
    // Predicated region
    $region6: #{tpu_custom_call.1} parent=1 // pred_check
      _
    $region7: #{tpu_custom_call.1} parent=1 // pred_check_branch
      %21 = sbr.rel (0) target = $region9
    $region8: #{tpu_custom_call.1} parent=1 // pred_region
      _
    $region9: #{tpu_custom_call.1} parent=1 // pred_fallthru
      _
    // Predicated region
    $region10: #{tpu_custom_call.1} parent=1 // pred_check
      _
    $region11: #{tpu_custom_call.1} parent=1 // pred_check_branch
      %23 = sbr.rel (0) target = $region13
    $region12: #{tpu_custom_call.1} parent=1 // pred_region
      _
    $region13: #{tpu_custom_call.1} parent=1 // pred_fallthru
      _
    // Predicated region
    $region14: #{tpu_custom_call.1} parent=1 // pred_check
      _
    $region15: #{tpu_custom_call.1} parent=1 // pred_check_branch
      %25 = sbr.rel (0) target = $region17
    $region16: #{tpu_custom_call.1} parent=1 // pred_region
      %26 = dma.done [#allocation3], 64
    $region17: #{tpu_custom_call.1} parent=1 // pred_fallthru
      _
    %v27 = vld [vmem:[#allocation2] sm:$0xf]
    %v28 = vlaneseq
    %v29 = vshrl.u32 %v28, 7
    %v30 = vadd.s32 %v29, 8
    %v31 = vadd.s32 %v29, 16
    %v32 = vadd.s32 %v29, 24
    %v33 = vadd.s32 %v29, 32
    %v34 = vadd.s32 %v29, 40
    %v35 = vadd.s32 %v29, 48
    %v36 = vadd.s32 %v29, 56
    %v37 = vadd.s32 %v29, 64
    %v38 = vadd.s32 %v29, 72
    %v39 = vadd.s32 %v29, 80
    %v40 = vadd.s32 %v29, 88
    %v41 = vadd.s32 %v29, 96
    %v42 = vadd.s32 %v29, 104
    %v43 = vadd.s32 %v29, 112
    %v44 = vadd.s32 %v29, 120
    %v45 = vlaneseq
    %v46 = vand.u32 %v45, 127
    %v47 = vshra.s32 %v29, 5
    %v48 = vshra.s32 %v30, 5
    %v49 = vshra.s32 %v31, 5
    %v50 = vshra.s32 %v32, 5
    %v51 = vshra.s32 %v33, 5
    %v52 = vshra.s32 %v34, 5
    %v53 = vshra.s32 %v35, 5
    %v54 = vshra.s32 %v36, 5
    %v55 = vshra.s32 %v37, 5
    %v56 = vshra.s32 %v38, 5
    %v57 = vshra.s32 %v39, 5
    %v58 = vshra.s32 %v40, 5
    %v59 = vshra.s32 %v41, 5
    %v60 = vshra.s32 %v42, 5
    %v61 = vshra.s32 %v43, 5
    %v62 = vshra.s32 %v44, 5
    %v63 = vshra.s32 %v46, 5
    %vm64 = vcmp.eq.s32.totalorder %v47, %v63
    %vm65 = vcmp.eq.s32.totalorder %v48, %v63
    %vm66 = vcmp.eq.s32.totalorder %v49, %v63
    %vm67 = vcmp.eq.s32.totalorder %v50, %v63
    %vm68 = vcmp.eq.s32.totalorder %v51, %v63
    %vm69 = vcmp.eq.s32.totalorder %v52, %v63
    %vm70 = vcmp.eq.s32.totalorder %v53, %v63
    %vm71 = vcmp.eq.s32.totalorder %v54, %v63
    %vm72 = vcmp.eq.s32.totalorder %v55, %v63
    %vm73 = vcmp.eq.s32.totalorder %v56, %v63
    %vm74 = vcmp.eq.s32.totalorder %v57, %v63
    %vm75 = vcmp.eq.s32.totalorder %v58, %v63
    %vm76 = vcmp.eq.s32.totalorder %v59, %v63
    %vm77 = vcmp.eq.s32.totalorder %v60, %v63
    %vm78 = vcmp.eq.s32.totalorder %v61, %v63
    %vm79 = vcmp.eq.s32.totalorder %v62, %v63
    %v80 = vand.u32 %v29, 31
    %v81 = vand.u32 %v30, 31
    %v82 = vand.u32 %v31, 31
    %v83 = vand.u32 %v32, 31
    %v84 = vand.u32 %v33, 31
    %v85 = vand.u32 %v34, 31
    %v86 = vand.u32 %v35, 31
    %v87 = vand.u32 %v36, 31
    %v88 = vand.u32 %v37, 31
    %v89 = vand.u32 %v38, 31
    %v90 = vand.u32 %v39, 31
    %v91 = vand.u32 %v40, 31
    %v92 = vand.u32 %v41, 31
    %v93 = vand.u32 %v42, 31
    %v94 = vand.u32 %v43, 31
    %v95 = vand.u32 %v44, 31
    %vm96 = vcmp.lt.s32.totalorder %v80, 32
    %vm97 = vcmp.lt.s32.totalorder %v81, 32
    %vm98 = vcmp.lt.s32.totalorder %v82, 32
    %vm99 = vcmp.lt.s32.totalorder %v83, 32
    %vm100 = vcmp.lt.s32.totalorder %v84, 32
    %vm101 = vcmp.lt.s32.totalorder %v85, 32
    %vm102 = vcmp.lt.s32.totalorder %v86, 32
    %vm103 = vcmp.lt.s32.totalorder %v87, 32
    %vm104 = vcmp.lt.s32.totalorder %v88, 32
    %vm105 = vcmp.lt.s32.totalorder %v89, 32
    %vm106 = vcmp.lt.s32.totalorder %v90, 32
    %vm107 = vcmp.lt.s32.totalorder %v91, 32
    %vm108 = vcmp.lt.s32.totalorder %v92, 32
    %vm109 = vcmp.lt.s32.totalorder %v93, 32
    %vm110 = vcmp.lt.s32.totalorder %v94, 32
    %vm111 = vcmp.lt.s32.totalorder %v95, 32
    %vm112 = vmand %vm64, %vm96
    %vm113 = vmand %vm65, %vm97
    %vm114 = vmand %vm66, %vm98
    %vm115 = vmand %vm67, %vm99
    %vm116 = vmand %vm68, %vm100
    %vm117 = vmand %vm69, %vm101
    %vm118 = vmand %vm70, %vm102
    %vm119 = vmand %vm71, %vm103
    %vm120 = vmand %vm72, %vm104
    %vm121 = vmand %vm73, %vm105
    %vm122 = vmand %vm74, %vm106
    %vm123 = vmand %vm75, %vm107
    %vm124 = vmand %vm76, %vm108
    %vm125 = vmand %vm77, %vm109
    %vm126 = vmand %vm78, %vm110
    %vm127 = vmand %vm79, %vm111
    %v128 = vsel %vm112, 1.0, 0.0
    %v129 = vsel %vm113, 1.0, 0.0
    %v130 = vsel %vm114, 1.0, 0.0
    %v131 = vsel %vm115, 1.0, 0.0
    %v132 = vsel %vm116, 1.0, 0.0
    %v133 = vsel %vm117, 1.0, 0.0
    %v134 = vsel %vm118, 1.0, 0.0
    %v135 = vsel %vm119, 1.0, 0.0
    %v136 = vsel %vm120, 1.0, 0.0
    %v137 = vsel %vm121, 1.0, 0.0
    %v138 = vsel %vm122, 1.0, 0.0
    %v139 = vsel %vm123, 1.0, 0.0
    %v140 = vsel %vm124, 1.0, 0.0
    %v141 = vsel %vm125, 1.0, 0.0
    %v142 = vsel %vm126, 1.0, 0.0
    %v143 = vsel %vm127, 1.0, 0.0
    %144 = vmatprep.subr.mxu0 0.0
    %145 = vmatpush1.msra.mxu0 %v128
    %146 = vmatprep.subr.mxu0 0.0
    %147 = vmatpush1.msra.mxu0 %v129
    %148 = vmatprep.subr.mxu0 0.0
    %149 = vmatpush1.msra.mxu0 %v130
    %150 = vmatprep.subr.mxu0 0.0
    %151 = vmatpush1.msra.mxu0 %v131
    %152 = vmatprep.subr.mxu0 0.0
    %153 = vmatpush1.msra.mxu0 %v132
    %154 = vmatprep.subr.mxu0 0.0
    %155 = vmatpush1.msra.mxu0 %v133
    %156 = vmatprep.subr.mxu0 0.0
    %157 = vmatpush1.msra.mxu0 %v134
    %158 = vmatprep.subr.mxu0 0.0
    %159 = vmatpush1.msra.mxu0 %v135
    %160 = vmatprep.subr.mxu0 0.0
    %161 = vmatpush1.msra.mxu0 %v136
    %162 = vmatprep.subr.mxu0 0.0
    %163 = vmatpush1.msra.mxu0 %v137
    %164 = vmatprep.subr.mxu0 0.0
    %165 = vmatpush1.msra.mxu0 %v138
    %166 = vmatprep.subr.mxu0 0.0
    %167 = vmatpush1.msra.mxu0 %v139
    %168 = vmatprep.subr.mxu0 0.0
    %169 = vmatpush1.msra.mxu0 %v140
    %170 = vmatprep.subr.mxu0 0.0
    %171 = vmatpush1.msra.mxu0 %v141
    %172 = vmatprep.subr.mxu0 0.0
    %173 = vmatpush1.msra.mxu0 %v142
    %174 = vmatprep.subr.mxu0 0.0
    %175 = vmatpush1.msra.mxu0 %v143
    %176 = vmatprep.subr.mxu0 0.0
    %177 = vmatpush1.msra.mxu0 0.0
    %178 = vmatprep.subr.mxu0 0.0
    %179 = vmatpush1.msra.mxu0 0.0
    %180 = vmatprep.subr.mxu0 0.0
    %181 = vmatpush1.msra.mxu0 0.0
    %182 = vmatprep.subr.mxu0 0.0
    %183 = vmatpush1.msra.mxu0 0.0
    %184 = vmatprep.subr.mxu0 0.0
    %185 = vmatpush1.msra.mxu0 0.0
    %186 = vmatprep.subr.mxu0 0.0
    %187 = vmatpush1.msra.mxu0 0.0
    %188 = vmatprep.subr.mxu0 0.0
    %189 = vmatpush1.msra.mxu0 0.0
    %190 = vmatprep.subr.mxu0 0.0
    %191 = vmatpush1.msra.mxu0 0.0
    %192 = vmatprep.subr.mxu0 0.0
    %193 = vmatpush1.msra.mxu0 0.0
    %194 = vmatprep.subr.mxu0 0.0
    %195 = vmatpush1.msra.mxu0 0.0
    %196 = vmatprep.subr.mxu0 0.0
    %197 = vmatpush1.msra.mxu0 0.0
    %198 = vmatprep.subr.mxu0 0.0
    %199 = vmatpush1.msra.mxu0 0.0
    %200 = vmatprep.subr.mxu0 0.0
    %201 = vmatpush1.msra.mxu0 0.0
    %202 = vmatprep.subr.mxu0 0.0
    %203 = vmatpush1.msra.mxu0 0.0
    %204 = vmatprep.subr.mxu0 0.0
    %205 = vmatpush1.msra.mxu0 0.0
    %206 = vmatprep.subr.mxu0 0.0
    %207 = vmatpush1.msra.mxu0 0.0
    %208 = vmatprep.mubr.f32.mxu0 0.0
    %209 = vmatmul.mubr.f32.gmra.mrb[0].mxu0 %v27
    %v210 = vpop.f32.mrb[0].mxu0
    %v211 = vadd.f32 0.0, %v210
    %v212 = vpop.f32.mrb[0].mxu0
    %213 = vdwg.mxu0
    %v214 = vmul.f32 %v211, 0.03125
    %v215 = vsub.f32 %v27, %v214
    %v216 = vmul.f32 %v215, %v215
    %217 = vmatprep.subr.mxu0 0.0
    %218 = vmatpush1.msra.mxu0 %v128
    %219 = vmatprep.subr.mxu0 0.0
    %220 = vmatpush1.msra.mxu0 %v129
    %221 = vmatprep.subr.mxu0 0.0
    %222 = vmatpush1.msra.mxu0 %v130
    %223 = vmatprep.subr.mxu0 0.0
    %224 = vmatpush1.msra.mxu0 %v131
    %225 = vmatprep.subr.mxu0 0.0
    %226 = vmatpush1.msra.mxu0 %v132
    %227 = vmatprep.subr.mxu0 0.0
    %228 = vmatpush1.msra.mxu0 %v133
    %229 = vmatprep.subr.mxu0 0.0
    %230 = vmatpush1.msra.mxu0 %v134
    %231 = vmatprep.subr.mxu0 0.0
    %232 = vmatpush1.msra.mxu0 %v135
    %233 = vmatprep.subr.mxu0 0.0
    %234 = vmatpush1.msra.mxu0 %v136
    %235 = vmatprep.subr.mxu0 0.0
    %236 = vmatpush1.msra.mxu0 %v137
    %237 = vmatprep.subr.mxu0 0.0
    %238 = vmatpush1.msra.mxu0 %v138
    %239 = vmatprep.subr.mxu0 0.0
    %240 = vmatpush1.msra.mxu0 %v139
    %241 = vmatprep.subr.mxu0 0.0
    %242 = vmatpush1.msra.mxu0 %v140
    %243 = vmatprep.subr.mxu0 0.0
    %244 = vmatpush1.msra.mxu0 %v141
    %245 = vmatprep.subr.mxu0 0.0
    %246 = vmatpush1.msra.mxu0 %v142
    %247 = vmatprep.subr.mxu0 0.0
    %248 = vmatpush1.msra.mxu0 %v143
    %249 = vmatprep.subr.mxu0 0.0
    %250 = vmatpush1.msra.mxu0 0.0
    %251 = vmatprep.subr.mxu0 0.0
    %252 = vmatpush1.msra.mxu0 0.0
    %253 = vmatprep.subr.mxu0 0.0
    %254 = vmatpush1.msra.mxu0 0.0
    %255 = vmatprep.subr.mxu0 0.0
    %256 = vmatpush1.msra.mxu0 0.0
    %257 = vmatprep.subr.mxu0 0.0
    %258 = vmatpush1.msra.mxu0 0.0
    %259 = vmatprep.subr.mxu0 0.0
    %260 = vmatpush1.msra.mxu0 0.0
    %261 = vmatprep.subr.mxu0 0.0
    %262 = vmatpush1.msra.mxu0 0.0
    %263 = vmatprep.subr.mxu0 0.0
    %264 = vmatpush1.msra.mxu0 0.0
    %265 = vmatprep.subr.mxu0 0.0
    %266 = vmatpush1.msra.mxu0 0.0
    %267 = vmatprep.subr.mxu0 0.0
    %268 = vmatpush1.msra.mxu0 0.0
    %269 = vmatprep.subr.mxu0 0.0
    %270 = vmatpush1.msra.mxu0 0.0
    %271 = vmatprep.subr.mxu0 0.0
    %272 = vmatpush1.msra.mxu0 0.0
    %273 = vmatprep.subr.mxu0 0.0
    %274 = vmatpush1.msra.mxu0 0.0
    %275 = vmatprep.subr.mxu0 0.0
    %276 = vmatpush1.msra.mxu0 0.0
    %277 = vmatprep.subr.mxu0 0.0
    %278 = vmatpush1.msra.mxu0 0.0
    %279 = vmatprep.subr.mxu0 0.0
    %280 = vmatpush1.msra.mxu0 0.0
    %281 = vmatprep.mubr.f32.mxu0 0.0
    %282 = vmatmul.mubr.f32.gmra.mrb[0].mxu0 %v216
    %v283 = vpop.f32.mrb[0].mxu0
    %v284 = vadd.f32 0.0, %v283
    %v285 = vpop.f32.mrb[0].mxu0
    %286 = vdwg.mxu0
    %v287 = vmul.f32 %v284, 0.032258064
    %v288 = vrsqrt.pop %v287
    %v289 = vmul.f32 %v287, %v288
    %vm290 = vcmp.eq.f32.partialorder %v287, inf
    %v291 = vsel %vm290, %v287, %v289
    %vm292 = vcmp.eq.f32.partialorder %v287, 0.0
    %v293 = vand.u32 %v287, 2147483648
    %v294 = vsel %vm292, %v293, %v291
    %v295 = vadd.f32 %v294, 1e-06
    %v296 = vrcp.pop %v295
    %v297 = vmul.f32 %v295, %v296
    %v298 = vsub.f32 2.0, %v297
    %v299 = vmul.f32 %v296, %v298
    %v300 = vld [vmem:[%s1] sm:$0x1]
    %v301 = vld [vmem:[%s2] sm:$0x1]
    %v302 = vmul.f32 %v215, %v299
    %v304 = vlaneseq
    %v305 = vshrl.u32 %v304, 7
    %v306 = vsub.s32 0, %v305
    %v307 = vrot.slane %v300, %v306
    %v309 = vmul.f32 %v307, %v302
    %v311 = vlaneseq
    %v312 = vshrl.u32 %v311, 7
    %v313 = vsub.s32 0, %v312
    %v314 = vrot.slane %v301, %v313
    %v316 = vadd.f32 %v309, %v314
    %317 = vst [vmem:[#allocation5] sm:$0xf] %v316
    // Predicated region
    $region18: #{tpu_custom_call.1} parent=1 // pred_check
      _
    $region19: #{tpu_custom_call.1} parent=1 // pred_check_branch
      %319 = sbr.rel (0) target = $region21
    $region20: #{tpu_custom_call.1} parent=1 // pred_region
      %s321 = ssub.s32 64, 64
      %322 = vsyncadd [#allocation4], %s321
      %s324 = sshll.u32 [#allocation5], 4
      %s325 = int_to_ptr.vmem [resolvable:$true] %s324
      %327 = dma.vmem_to_hbm [thread:$0]  %s325, 64, %s3, [#allocation4]
    $region21: #{tpu_custom_call.1} parent=1 // pred_fallthru
      _
    // Predicated region
    $region22: #{tpu_custom_call.1} parent=1 // pred_check
      _
    $region23: #{tpu_custom_call.1} parent=1 // pred_check_branch
      %329 = sbr.rel (0) target = $region25
    $region24: #{tpu_custom_call.1} parent=1 // pred_region
      %330 = dma.done [#allocation4], 64
    $region25: #{tpu_custom_call.1} parent=1 // pred_fallthru
      _
    %331 = vsyncpa [#allocation3], 1
    %332 = vsyncpa [#allocation4], 1

</llo_original>
